<compile_context>
chip_gen: v7x
topology: tpu7x:2x2x1
jax: 0.10.0
libtpu: 0.0.40
codegen_flags: <defaults>
</compile_context>

<pallas_src>
import random

import jax
import jax.numpy as jnp
import numpy as np
from jax.experimental import pallas as pl
from jax.experimental.pallas import tpu as pltpu


def _round_up(x: int, m: int) -> int:
    return ((x + m - 1) // m) * m


def mean_agg_kernel(mask_ref, emb_ref, out_ref, deg_ref):
    """out += mask_tile @ emb_tile ; deg += row-sum(mask_tile); scale at end."""
    k = pl.program_id(2)

    @pl.when(k == 0)
    def _():
        out_ref[...] = jnp.zeros_like(out_ref)
        deg_ref[...] = jnp.zeros_like(deg_ref)

    mask = mask_ref[...]                                   # (tm, tk) bf16, 0/1
    # Raw 0/1 mask straight into the MXU, f32 accumulation directly in the
    # VMEM-resident output block (its (i, j) index is constant across k).
    out_ref[...] += jnp.dot(mask, emb_ref[...],
                            preferred_element_type=jnp.float32)
    # Per-row neighbor count for this K tile (exact in f32).  With tn = Dp the
    # j axis has a single block, so this is computed exactly once per row; it
    # is kept unconditional so the kernel stays correct for any grid sharding.
    deg_ref[...] += jnp.sum(mask.astype(jnp.float32), axis=1, keepdims=True)

    @pl.when(k == pl.num_programs(2) - 1)
    def _():
        # Guard empty / padded rows (the PyTorch original would emit NaN here).
        inv = 1.0 / jnp.maximum(deg_ref[...], 1.0)         # exact, only (tm, 1)
        out_ref[...] = out_ref[...] * inv


def _select_tiles(Bp: int, Up: int, Dp: int,
                  budget_bytes: int = 28 * (1 << 20)):
    """Pick (tm, tk, tn) to fill a v7x-safe VMEM budget.

    Prefers tn = full D so the (B, U) mask is DMA'd exactly once; falls back
    to 512-wide output tiles only if D is enormous.
    """
    def footprint(tm, tk, tn):
        # double-buffered bf16 inputs + double-buffered f32 output + deg scratch
        return 2 * tm * tk * 2 + 2 * tk * tn * 2 + 2 * tm * tn * 4 + tm * 4

    tm = min(512, Bp)
    tk = min(512, Up)
    tn = Dp if footprint(tm, tk, Dp) <= budget_bytes else min(512, Dp)

    # Shrink tm (then tk) if a very wide D still blows the budget.
    while footprint(tm, tk, tn) > budget_bytes and tm > 16:
        tm = max(16, tm // 2)
    while footprint(tm, tk, tn) > budget_bytes and tk > 128:
        tk = max(128, tk // 2)

    # v7x has 2 TensorCores: keep >= 2 blocks on the parallel (i, j) axes when
    # the batch is large enough, otherwise one core idles.
    if (Bp // tm) * (max(1, Dp // tn)) < 2 and tm >= 256:
        tm //= 2

    return tm, tk, tn, footprint(tm, tk, tn)


def mean_aggregate(mask: jax.Array, embed_matrix: jax.Array) -> jax.Array:
    """(B, U) 0/1 mask, (U, D) embeddings -> (B, D) mean-aggregated features."""
    B, U = mask.shape
    U2, D = embed_matrix.shape
    assert U == U2

    # Pad to TPU-friendly extents.
    Bp = _round_up(B, 16)          # bf16 sublane packing
    Up = _round_up(U, 128)
    Dp = _round_up(D, 128)         # lane-dense output last dim

    tm, tk, tn, footprint = _select_tiles(Bp, Up, Dp)

    # Re-round padded extents so the tiles divide them exactly.
    Bp = _round_up(Bp, tm)
    Up = _round_up(Up, tk)
    Dp = _round_up(Dp, tn)

    # bf16 is lossless for the 0/1 mask; halves mask/embedding DMA bytes.
    # Skip the wrapper-side cast / pad passes when the caller already provides
    # bf16 / tile-aligned inputs (they read+write full HBM arrays otherwise).
    if mask.dtype != jnp.bfloat16:
        mask = mask.astype(jnp.bfloat16)
    if mask.shape != (Bp, Up):
        mask = jnp.pad(mask, ((0, Bp - B), (0, Up - U)))
    if embed_matrix.dtype != jnp.bfloat16:
        embed_matrix = embed_matrix.astype(jnp.bfloat16)
    if embed_matrix.shape != (Up, Dp):
        embed_matrix = jnp.pad(embed_matrix, ((0, Up - U), (0, Dp - D)))

    grid = (Bp // tm, Dp // tn, Up // tk)   # reduction axis (U) innermost

    vmem_limit = int(min(60 * (1 << 20),
                         max(32 * (1 << 20), footprint + 4 * (1 << 20))))

    out = pl.pallas_call(
        mean_agg_kernel,
        out_shape=jax.ShapeDtypeStruct((Bp, Dp), jnp.float32),
        grid_spec=pltpu.PrefetchScalarGridSpec(
            num_scalar_prefetch=0,
            grid=grid,
            in_specs=[
                pl.BlockSpec((tm, tk), lambda i, j, k: (i, k)),   # mask
                pl.BlockSpec((tk, tn), lambda i, j, k: (k, j)),   # embeddings
            ],
            out_specs=pl.BlockSpec((tm, tn), lambda i, j, k: (i, j)),
            scratch_shapes=[
                pltpu.VMEM((tm, 1), jnp.float32),    # per-row neighbor count
            ],
        ),
        compiler_params=pltpu.CompilerParams(
            dimension_semantics=("parallel", "parallel", "arbitrary"),
            vmem_limit_bytes=vmem_limit,
        ),
    )(mask, embed_matrix)

    return out[:B, :D]


def build_mask_and_unique(nodes, to_neighs, num_sample=10, gcn=False, seed=0,
                          dtype=np.float32):
    """Host-side glue replicating the module's set/sampling logic."""
    rng = random.Random(seed)
    if num_sample is not None:
        samp_neighs = [
            set(rng.sample(sorted(to_neigh), num_sample))
            if len(to_neigh) >= num_sample
            else set(to_neigh)
            for to_neigh in to_neighs
        ]
    else:
        samp_neighs = [set(t) for t in to_neighs]
    if gcn:
        samp_neighs = [
            samp_neigh | {nodes[i]} for i, samp_neigh in enumerate(samp_neighs)
        ]
    unique_nodes_list = sorted(set.union(*samp_neighs))
    unique_nodes = {n: i for i, n in enumerate(unique_nodes_list)}

    # Build the mask directly in the kernel's input dtype so the device-side
    # cast pass is skipped entirely (values are exactly 0/1, so bf16 is exact).
    mask = np.zeros((len(samp_neighs), len(unique_nodes)), dtype=dtype)
    for i, samp_neigh in enumerate(samp_neighs):
        for n in samp_neigh:
            mask[i, unique_nodes[n]] = 1.0
    return mask, unique_nodes_list


if __name__ == "__main__":
    # --- deterministic synthetic graph + feature table --------------------
    num_total_nodes = 64   # total nodes in the "graph"
    feat_dim = 32          # hidden size of node features
    batch = 8              # nodes in the batch
    num_sample = 5         # neighbors sampled per node

    key = jax.random.PRNGKey(0)
    k_feat, _ = jax.random.split(key)

    # `features` in the module is a lookup fn; here it is an embedding table.
    feature_table = jax.random.normal(
        k_feat, (num_total_nodes, feat_dim), dtype=jnp.float32
    )

    # Deterministic neighbor sets for each batch node (>=3 neighbors each).
    graph_rng = random.Random(0)
    nodes = list(range(batch))
    to_neighs = [
        set(graph_rng.sample(range(num_total_nodes), graph_rng.randint(3, 12)))
        for _ in range(batch)
    ]

    mask_np, unique_nodes_list = build_mask_and_unique(
        nodes, to_neighs, num_sample=num_sample, gcn=False, seed=0,
        dtype=jnp.bfloat16,                                  # kernel dtype
    )
    mask = jnp.asarray(mask_np)                              # (B, U) bf16
    # Cast the feature table to bf16 once, then gather the rows actually used.
    embed_matrix = feature_table.astype(jnp.bfloat16)[
        jnp.asarray(unique_nodes_list)]                      # (U, D) bf16

    # --- Pallas kernel -----------------------------------------------------
    to_feats = mean_aggregate(mask, embed_matrix)
    to_feats = jax.block_until_ready(to_feats)

    # --- sanity check vs. plain reference (f32) ----------------------------
    mask_f32 = np.asarray(mask_np, dtype=np.float32)
    emb_f32 = np.asarray(feature_table)[np.asarray(unique_nodes_list)]
    ref = (mask_f32 / mask_f32.sum(axis=1, keepdims=True)) @ emb_f32
    # bf16 embeddings -> compare with a relaxed tolerance.
    np.testing.assert_allclose(
        np.asarray(to_feats), ref, rtol=2e-2, atol=2e-2
    )

    print("KERNEL_OK")
</pallas_src>

<mosaic_0001>
module attributes {stable_mosaic.version = 11 : i64} {
  func.func @mean_agg_kernel(%arg0: i32, %arg1: i32, %arg2: i32, %arg3: memref<16x128xbf16, #tpu.memory_space<vmem>>, %arg4: memref<128x128xbf16, #tpu.memory_space<vmem>>, %arg5: memref<16x128xf32, #tpu.memory_space<vmem>>, %arg6: memref<16x1xf32, #tpu.memory_space<vmem>>) attributes {dimension_semantics = [#tpu.dimension_semantics<parallel>, #tpu.dimension_semantics<parallel>, #tpu.dimension_semantics<arbitrary>], iteration_bounds = array<i64: 1, 1, 1>, scalar_prefetch = 0 : i64, scratch_operands = 1 : i64, tpu.core_type = #tpu.core_type<tc>, window_params = [{transform_indices = @transform_0, window_bounds = array<i64: 16, 128>}, {transform_indices = @transform_1, window_bounds = array<i64: 128, 128>}, {transform_indices = @transform_2, window_bounds = array<i64: 16, 128>}]} {
    %c0_i32 = arith.constant 0 : i32
    %0 = arith.cmpi eq, %arg2, %c0_i32 : i32
    %1 = arith.extui %0 : i1 to i32
    %c0_i32_0 = arith.constant 0 : i32
    %2 = arith.cmpi ne, %1, %c0_i32_0 : i32
    scf.if %2 {
      %cst_15 = arith.constant 0.000000e+00 : f32
      %18 = vector.broadcast %cst_15 : f32 to vector<16x128xf32>
      %c0_16 = arith.constant 0 : index
      %c0_17 = arith.constant 0 : index
      %19 = vector.load %arg5[%c0_16, %c0_17] : memref<16x128xf32, #tpu.memory_space<vmem>>, vector<16x128xf32>
      tpu.vector_store %arg5[%c0_16, %c0_17], %18 {strides = array<i32>} : memref<16x128xf32, #tpu.memory_space<vmem>>, vector<16x128xf32>,
      %cst_18 = arith.constant 0.000000e+00 : f32
      %20 = vector.broadcast %cst_18 : f32 to vector<16x1xf32>
      %c0_19 = arith.constant 0 : index
      %c0_20 = arith.constant 0 : index
      %21 = vector.load %arg6[%c0_19, %c0_20] : memref<16x1xf32, #tpu.memory_space<vmem>>, vector<16x1xf32>
      tpu.vector_store %arg6[%c0_19, %c0_20], %20 {strides = array<i32>} : memref<16x1xf32, #tpu.memory_space<vmem>>, vector<16x1xf32>,
    } else {
    }
    %c0 = arith.constant 0 : index
    %c0_1 = arith.constant 0 : index
    %3 = vector.load %arg3[%c0, %c0_1] : memref<16x128xbf16, #tpu.memory_space<vmem>>, vector<16x128xbf16>
    %c0_2 = arith.constant 0 : index
    %c0_3 = arith.constant 0 : index
    %4 = vector.load %arg5[%c0_2, %c0_3] : memref<16x128xf32, #tpu.memory_space<vmem>>, vector<16x128xf32>
    %c0_4 = arith.constant 0 : index
    %c0_5 = arith.constant 0 : index
    %5 = vector.load %arg4[%c0_4, %c0_5] : memref<128x128xbf16, #tpu.memory_space<vmem>>, vector<128x128xbf16>
    %cst = arith.constant dense<0.000000e+00> : vector<16x128xf32>
    %6 = tpu.matmul %3, %5, %cst {dimension_numbers = #tpu.dot_dimension_numbers<[1], [0], [0], [1], [0, 0, 1, 1], [], []>} : vector<16x128xbf16>, vector<128x128xbf16>, vector<16x128xf32> -> vector<16x128xf32>
    %7 = arith.addf %4, %6 : vector<16x128xf32>
    %c0_6 = arith.constant 0 : index
    %c0_7 = arith.constant 0 : index
    %8 = vector.load %arg5[%c0_6, %c0_7] : memref<16x128xf32, #tpu.memory_space<vmem>>, vector<16x128xf32>
    tpu.vector_store %arg5[%c0_6, %c0_7], %7 {strides = array<i32>} : memref<16x128xf32, #tpu.memory_space<vmem>>, vector<16x128xf32>,
    %c0_8 = arith.constant 0 : index
    %c0_9 = arith.constant 0 : index
    %9 = vector.load %arg6[%c0_8, %c0_9] : memref<16x1xf32, #tpu.memory_space<vmem>>, vector<16x1xf32>
    %10 = arith.extf %3 : vector<16x128xbf16> to vector<16x128xf32>
    %cst_10 = arith.constant dense<0.000000e+00> : vector<16xf32>
    %11 = vector.multi_reduction <add>, %10, %cst_10 [1] : vector<16x128xf32> to vector<16xf32>
    %12 = vector.shape_cast %11 : vector<16xf32> to vector<16x1xf32>
    %13 = arith.addf %9, %12 : vector<16x1xf32>
    %c0_11 = arith.constant 0 : index
    %c0_12 = arith.constant 0 : index
    %14 = vector.load %arg6[%c0_11, %c0_12] : memref<16x1xf32, #tpu.memory_space<vmem>>, vector<16x1xf32>
    tpu.vector_store %arg6[%c0_11, %c0_12], %13 {strides = array<i32>} : memref<16x1xf32, #tpu.memory_space<vmem>>, vector<16x1xf32>,
    %c0_i32_13 = arith.constant 0 : i32
    %15 = arith.cmpi eq, %arg2, %c0_i32_13 : i32
    %16 = arith.extui %15 : i1 to i32
    %c0_i32_14 = arith.constant 0 : i32
    %17 = arith.cmpi ne, %16, %c0_i32_14 : i32
    scf.if %17 {
      %c0_15 = arith.constant 0 : index
      %c0_16 = arith.constant 0 : index
      %18 = vector.load %arg6[%c0_15, %c0_16] : memref<16x1xf32, #tpu.memory_space<vmem>>, vector<16x1xf32>
      %cst_17 = arith.constant 1.000000e+00 : f32
      %19 = vector.broadcast %cst_17 : f32 to vector<16x1xf32>
      %20 = arith.maximumf %18, %19 : vector<16x1xf32>
      %cst_18 = arith.constant 1.000000e+00 : f32
      %21 = vector.broadcast %cst_18 : f32 to vector<16x1xf32>
      %22 = arith.divf %21, %20 : vector<16x1xf32>
      %c0_19 = arith.constant 0 : index
      %c0_20 = arith.constant 0 : index
      %23 = vector.load %arg5[%c0_19, %c0_20] : memref<16x128xf32, #tpu.memory_space<vmem>>, vector<16x128xf32>
      %24 = vector.broadcast %22 : vector<16x1xf32> to vector<16x128xf32>
      %25 = arith.mulf %23, %24 : vector<16x128xf32>
      %c0_21 = arith.constant 0 : index
      %c0_22 = arith.constant 0 : index
      %26 = vector.load %arg5[%c0_21, %c0_22] : memref<16x128xf32, #tpu.memory_space<vmem>>, vector<16x128xf32>
      tpu.vector_store %arg5[%c0_21, %c0_22], %25 {strides = array<i32>} : memref<16x128xf32, #tpu.memory_space<vmem>>, vector<16x128xf32>,
    } else {
    }
    return
  }
  func.func @transform_0(%arg0: i32, %arg1: i32, %arg2: i32) -> (i32, i32) {
    %c0_i32 = arith.constant 0 : i32
    return %arg0, %arg2 : i32, i32
  }
  func.func @transform_1(%arg0: i32, %arg1: i32, %arg2: i32) -> (i32, i32) {
    %c0_i32 = arith.constant 0 : i32
    return %arg2, %arg1 : i32, i32
  }
  func.func @transform_2(%arg0: i32, %arg1: i32, %arg2: i32) -> (i32, i32) {
    %c0_i32 = arith.constant 0 : i32
    return %arg0, %arg1 : i32, i32
  }
}

</mosaic_0001>

<llo_original>
// kernel: tpu_custom_call.1
$region0: #{tpu_custom_call.1}
  #allocation0 [shape = 'u32[]', space=smem, size = 0x4, offset = 0x4, fixed_abs, tag = 'smem constant byte address 0x4 - core index']
  #allocation1 [shape = 'u32[144,128]{1,0:T(1,128)}', space=vmem, size = 0x12000, scoped, tag = 'internal scratch']
  #allocation2 [shape = 'f32[16,1]{1,0:T(8,128)}', space=vmem, size = 0x2000, scoped, tag = 'scratch operand']
  %s0 = inlined_call_operand.hbm [shape: bf16[16,128], index: 0, kind: input, shape index: {}]
  %s1 = inlined_call_operand.hbm [shape: bf16[128,128], index: 1, kind: input, shape index: {}]
  %s2 = inlined_call_operand.hbm [shape: f32[16,128], index: 2, kind: output, shape index: {}]
  %s3 = sld [smem:[#allocation0]]
  $region34: #{tpu_custom_call.1} parent=0
    _
  %s5 = ssub.s32 1, %s3
  %s6 = scalar_select 0, %s5, %s3
  $region1: #{tpu_custom_call.1} parent=0
    #allocation3 [shape = 'u8[4096]{0}', space=vmem, size = 0x1000, scoped, tag = 'input window, operand 0, single buffered']
    #allocation4 [shape = 's32[1]{0}', space=sflag, size = 0x4, scoped, tag = 'scoped memory for tpu_custom_call.1']
    #allocation5 [shape = 's32[1]{0}', space=sflag, size = 0x4, scoped, tag = 'scoped memory for tpu_custom_call.1']
    #allocation6 [shape = 'u8[32768]{0}', space=vmem, size = 0x8000, scoped, tag = 'input window, operand 1, single buffered']
    #allocation7 [shape = 's32[1]{0}', space=sflag, size = 0x4, scoped, tag = 'scoped memory for tpu_custom_call.1']
    #allocation8 [shape = 'u8[8192]{0}', space=vmem, size = 0x2000, scoped, tag = 'output window, operand 0, single buffered']
    %7 = vsyncpa [#allocation4], 0
    %8 = vsyncpa [#allocation7], 0
    %9 = vsyncpa [#allocation5], 0
    // Predicated region
    $region2: #{tpu_custom_call.1} parent=1 // pred_check
      _
    $region3: #{tpu_custom_call.1} parent=1 // pred_check_branch
      %11 = sbr.rel (0) target = $region5
    $region4: #{tpu_custom_call.1} parent=1 // pred_region
      %s13 = ssub.s32 128, 128
      %14 = vsyncadd [#allocation4], %s13
      %s15 = sshll.u32 [#allocation3], 4
      %s16 = int_to_ptr.vmem [resolvable:$true] %s15
      %21 = dma.hbm_to_vmem [thread:$0]  %s0, 128, %s16, [#allocation4], 64, 64, 4
    $region5: #{tpu_custom_call.1} parent=1 // pred_fallthru
      _
    // Predicated region
    $region6: #{tpu_custom_call.1} parent=1 // pred_check
      _
    $region7: #{tpu_custom_call.1} parent=1 // pred_check_branch
      %23 = sbr.rel (0) target = $region9
    $region8: #{tpu_custom_call.1} parent=1 // pred_region
      %s25 = ssub.s32 1024, 1024
      %26 = vsyncadd [#allocation7], %s25
      %s27 = sshll.u32 [#allocation6], 4
      %s28 = int_to_ptr.vmem [resolvable:$true] %s27
      %33 = dma.hbm_to_vmem [thread:$0]  %s1, 1024, %s28, [#allocation7], 64, 64, 4
    $region9: #{tpu_custom_call.1} parent=1 // pred_fallthru
      _
    // Predicated region
    $region10: #{tpu_custom_call.1} parent=1 // pred_check
      _
    $region11: #{tpu_custom_call.1} parent=1 // pred_check_branch
      %35 = sbr.rel (0) target = $region13
    $region12: #{tpu_custom_call.1} parent=1 // pred_region
      %36 = dma.done [#allocation4], 128
    $region13: #{tpu_custom_call.1} parent=1 // pred_fallthru
      _
    // Predicated region
    $region14: #{tpu_custom_call.1} parent=1 // pred_check
      _
    $region15: #{tpu_custom_call.1} parent=1 // pred_check_branch
      %38 = sbr.rel (0) target = $region17
    $region16: #{tpu_custom_call.1} parent=1 // pred_region
      %39 = dma.done [#allocation7], 1024
    $region17: #{tpu_custom_call.1} parent=1 // pred_fallthru
      _
    %p41 = scmp.eq.s32.totalorder 0, 0
    // Predicated region
    $region18: #{tpu_custom_call.1} parent=1 // pred_check
      %p42 = pneg %p41
    $region19: #{tpu_custom_call.1} parent=1 // pred_check_branch
      %44 = sbr.rel (%p42) target = $region21
    $region20: #{tpu_custom_call.1} parent=1 // pred_region
      %45 = vst [vmem:[#allocation8] sm:$0xff] 0.0
      %46 = vst [vmem:[#allocation8 + $0x8] sm:$0xff] 0.0
      %vm47 = vcmask 7168
      %48 = vst.msk [vmem:[#allocation2] sm:$0xff] %vm47, 0.0
      %49 = vst.msk [vmem:[#allocation2 + $0x8] sm:$0xff] %vm47, 0.0
    $region21: #{tpu_custom_call.1} parent=1 // pred_fallthru
      _
    %v50 = vld [vmem:[#allocation3] sm:$0xf]
    %v51 = vld [vmem:[#allocation3 + $0x4] sm:$0xf]
    %v52 = vld [vmem:[#allocation8] sm:$0xff]
    %v53 = vld [vmem:[#allocation8 + $0x8] sm:$0xff]
    %v54 = vld [vmem:[#allocation6] sm:$0xf]
    %v55 = vld [vmem:[#allocation6 + $0x4] sm:$0xf]
    %v56 = vld [vmem:[#allocation6 + $0x8] sm:$0xf]
    %v57 = vld [vmem:[#allocation6 + $0xc] sm:$0xf]
    %v58 = vld [vmem:[#allocation6 + $0x10] sm:$0xf]
    %v59 = vld [vmem:[#allocation6 + $0x14] sm:$0xf]
    %v60 = vld [vmem:[#allocation6 + $0x18] sm:$0xf]
    %v61 = vld [vmem:[#allocation6 + $0x1c] sm:$0xf]
    %v62 = vld [vmem:[#allocation6 + $0x20] sm:$0xf]
    %v63 = vld [vmem:[#allocation6 + $0x24] sm:$0xf]
    %v64 = vld [vmem:[#allocation6 + $0x28] sm:$0xf]
    %v65 = vld [vmem:[#allocation6 + $0x2c] sm:$0xf]
    %v66 = vld [vmem:[#allocation6 + $0x30] sm:$0xf]
    %v67 = vld [vmem:[#allocation6 + $0x34] sm:$0xf]
    %v68 = vld [vmem:[#allocation6 + $0x38] sm:$0xf]
    %v69 = vld [vmem:[#allocation6 + $0x3c] sm:$0xf]
    %v72 = vunpack.c.l.b16 %v50
    %v73 = vunpack.c.l.b16 %v51
    %v74 = vpack.c.b16 %v73, %v72
    %v92 = vunpack.c.l.b16 %v54
    %v93 = vunpack.c.l.b16 %v55
    %v94 = vunpack.c.l.b16 %v56
    %v95 = vunpack.c.l.b16 %v57
    %v96 = vunpack.c.l.b16 %v58
    %v97 = vunpack.c.l.b16 %v59
    %v98 = vunpack.c.l.b16 %v60
    %v99 = vunpack.c.l.b16 %v61
    %v100 = vunpack.c.l.b16 %v62
    %v101 = vunpack.c.l.b16 %v63
    %v102 = vunpack.c.l.b16 %v64
    %v103 = vunpack.c.l.b16 %v65
    %v104 = vunpack.c.l.b16 %v66
    %v105 = vunpack.c.l.b16 %v67
    %v106 = vunpack.c.l.b16 %v68
    %v107 = vunpack.c.l.b16 %v69
    %v108 = vpack.c.b16 %v93, %v92
    %v109 = vpack.c.b16 %v95, %v94
    %v110 = vpack.c.b16 %v97, %v96
    %v111 = vpack.c.b16 %v99, %v98
    %v112 = vpack.c.b16 %v101, %v100
    %v113 = vpack.c.b16 %v103, %v102
    %v114 = vpack.c.b16 %v105, %v104
    %v115 = vpack.c.b16 %v107, %v106
    %124 = vmatprep.subr.bf16.mxu0 0
    %125 = vmatpush1.bf16.msra.mxu0 %v108
    %126 = vmatprep.subr.bf16.mxu0 0
    %127 = vmatpush1.bf16.msra.mxu0 %v109
    %128 = vmatprep.subr.bf16.mxu0 0
    %129 = vmatpush1.bf16.msra.mxu0 %v110
    %130 = vmatprep.subr.bf16.mxu0 0
    %131 = vmatpush1.bf16.msra.mxu0 %v111
    %132 = vmatprep.subr.bf16.mxu0 0
    %133 = vmatpush1.bf16.msra.mxu0 %v112
    %134 = vmatprep.subr.bf16.mxu0 0
    %135 = vmatpush1.bf16.msra.mxu0 %v113
    %136 = vmatprep.subr.bf16.mxu0 0
    %137 = vmatpush1.bf16.msra.mxu0 %v114
    %138 = vmatprep.subr.bf16.mxu0 0
    %139 = vmatpush1.bf16.msra.mxu0 %v115
    %140 = vmatprep.subr.bf16.mxu0 0
    %141 = vmatpush1.bf16.msra.mxu0 0
    %142 = vmatprep.subr.bf16.mxu0 0
    %143 = vmatpush1.bf16.msra.mxu0 0
    %144 = vmatprep.subr.bf16.mxu0 0
    %145 = vmatpush1.bf16.msra.mxu0 0
    %146 = vmatprep.subr.bf16.mxu0 0
    %147 = vmatpush1.bf16.msra.mxu0 0
    %148 = vmatprep.subr.bf16.mxu0 0
    %149 = vmatpush1.bf16.msra.mxu0 0
    %150 = vmatprep.subr.bf16.mxu0 0
    %151 = vmatpush1.bf16.msra.mxu0 0
    %152 = vmatprep.subr.bf16.mxu0 0
    %153 = vmatpush1.bf16.msra.mxu0 0
    %154 = vmatprep.subr.bf16.mxu0 0
    %155 = vmatpush1.bf16.msra.mxu0 0
    %156 = vmatprep.mubr.bf16.mxu0 0
    %157 = vmatmul.mubr.bf16.gmra.mrb[0].mxu0 %v74
    %v158 = vpop.f32.mrb[0].mxu0
    %v159 = vadd.f32 0.0, %v158
    %v160 = vpop.f32.mrb[0].mxu0
    %v161 = vpop.f32.mrb[0].mxu0
    %v162 = vadd.f32 0.0, %v161
    %v163 = vpop.f32.mrb[0].mxu0
    %164 = vdwg.mxu0
    %v165 = vadd.f32 %v52, %v159
    %v166 = vadd.f32 %v53, %v162
    %167 = vst [vmem:[#allocation8] sm:$0xff] %v165
    %168 = vst [vmem:[#allocation8 + $0x8] sm:$0xff] %v166
    %v169 = vld [vmem:[#allocation2] sm:$0xff]
    %v170 = vld [vmem:[#allocation2 + $0x8] sm:$0xff]
    %v171 = vunpack.c.l.bf16 %v50
    %v172 = vunpack.c.l.bf16 %v51
    %173 = vadd.xlane.f32.xlu0 %v171
    %v174 = vpop.xlane.xlu0 %173
    %175 = vadd.xlane.f32.xlu0 %v172
    %v176 = vpop.xlane.xlu0 %175
    %v177 = vadd.f32 %v169, %v174
    %v178 = vadd.f32 %v170, %v176
    %vm179 = vcmask 7168
    %180 = vst.msk [vmem:[#allocation2] sm:$0xff] %vm179, %v177
    %181 = vst.msk [vmem:[#allocation2 + $0x8] sm:$0xff] %vm179, %v178
    // Predicated region
    $region22: #{tpu_custom_call.1} parent=1 // pred_check
      %p182 = pneg %p41
    $region23: #{tpu_custom_call.1} parent=1 // pred_check_branch
      %184 = sbr.rel (%p182) target = $region25
    $region24: #{tpu_custom_call.1} parent=1 // pred_region
      %v185 = vld [vmem:[#allocation2] sm:$0xff]
      %v186 = vld [vmem:[#allocation2 + $0x8] sm:$0xff]
      %v187 = vmax.f32 %v185, 1.0
      %v188 = vmax.f32 %v186, 1.0
      %v189 = vrcp.pop %v187
      %v190 = vmul.f32 1.0, %v189
      %v191 = vrcp.pop %v188
      %v192 = vmul.f32 1.0, %v191
      %v193 = vld [vmem:[#allocation8] sm:$0xff]
      %v194 = vld [vmem:[#allocation8 + $0x8] sm:$0xff]
      %196 = vset.pattern.permute.xlu0 0
      %197 = vperm.xlu0 %196, %v190
      %v198 = vpop.permute.xlu0 %197
      %201 = vset.pattern.permute.xlu0 0
      %202 = vperm.xlu0 %201, %v192
      %v203 = vpop.permute.xlu0 %202
      %v205 = vmul.f32 %v193, %v198
      %v206 = vmul.f32 %v194, %v203
      %207 = vst [vmem:[#allocation8] sm:$0xff] %v205
      %208 = vst [vmem:[#allocation8 + $0x8] sm:$0xff] %v206
    $region25: #{tpu_custom_call.1} parent=1 // pred_fallthru
      _
    // Predicated region
    $region26: #{tpu_custom_call.1} parent=1 // pred_check
      _
    $region27: #{tpu_custom_call.1} parent=1 // pred_check_branch
      %210 = sbr.rel (0) target = $region29
    $region28: #{tpu_custom_call.1} parent=1 // pred_region
      %s212 = ssub.s32 256, 256
      %213 = vsyncadd [#allocation5], %s212
      %s214 = sshll.u32 [#allocation8], 4
      %s215 = int_to_ptr.vmem [resolvable:$true] %s214
      %220 = dma.vmem_to_hbm [thread:$0]  %s215, 256, %s2, [#allocation5], 128, 128, 8
    $region29: #{tpu_custom_call.1} parent=1 // pred_fallthru
      _
    // Predicated region
    $region30: #{tpu_custom_call.1} parent=1 // pred_check
      _
    $region31: #{tpu_custom_call.1} parent=1 // pred_check_branch
      %222 = sbr.rel (0) target = $region33
    $region32: #{tpu_custom_call.1} parent=1 // pred_region
      %223 = dma.done [#allocation5], 256
    $region33: #{tpu_custom_call.1} parent=1 // pred_fallthru
      _
    %224 = vsyncpa [#allocation4], 1
    %225 = vsyncpa [#allocation7], 1
    %226 = vsyncpa [#allocation5], 1

</llo_original>
